<compile_context>
chip_gen: v7x
topology: tpu7x:2x2x1
jax: 0.10.0
libtpu: 0.0.40
codegen_flags: <defaults>
</compile_context>

<pallas_src>
import jax
import jax.numpy as jnp
from jax.experimental import pallas as pl
from jax.experimental.pallas import tpu as pltpu

_H1 = 256
_H2 = 128
_LANE = 128
_MIN_PALLAS_BATCH = 8
_MAX_BATCH_TILE = 512


def _round_up(x, m):
    return (x + m - 1) // m * m


def _qnet_kernel(x_ref, w1_ref, b1_ref, w2_ref, b2_ref, w3_ref, b3_ref, out_ref):
    # Layer 1: [TB,S](bf16) @ [S,256](bf16) -> f32 acc; bias + ReLU in f32.
    h1 = jnp.dot(x_ref[...], w1_ref[...], preferred_element_type=jnp.float32)
    h1 = jnp.maximum(h1 + b1_ref[...], 0.0)
    # Layer 2: [TB,256] @ [256,128]
    h2 = jnp.dot(h1.astype(jnp.bfloat16), w2_ref[...],
                 preferred_element_type=jnp.float32)
    h2 = jnp.maximum(h2 + b2_ref[...], 0.0)
    # Layer 3: [TB,128] @ [128,A_pad]  (output padded to a full 128-lane slab)
    q = jnp.dot(h2.astype(jnp.bfloat16), w3_ref[...],
                preferred_element_type=jnp.float32)
    out_ref[...] = (q + b3_ref[...]).astype(out_ref.dtype)


def _forward_f32(x, params):
    """Pure f32 reference (also used as the tiny-batch fast path)."""
    w1, b1, w2, b2, w3, b3 = params
    h1 = jnp.maximum(x @ w1 + b1, 0.0)
    h2 = jnp.maximum(h1 @ w2 + b2, 0.0)
    return h2 @ w3 + b3


def _forward_bf16_ref(x, params):
    """Reference matching the kernel's dtype policy (bf16 dots, f32 acc)."""
    w1, b1, w2, b2, w3, b3 = params
    bf = jnp.bfloat16
    h1 = jnp.dot(x.astype(bf), w1.astype(bf), preferred_element_type=jnp.float32)
    h1 = jnp.maximum(h1 + b1, 0.0)
    h2 = jnp.dot(h1.astype(bf), w2.astype(bf), preferred_element_type=jnp.float32)
    h2 = jnp.maximum(h2 + b2, 0.0)
    return jnp.dot(h2.astype(bf), w3.astype(bf),
                   preferred_element_type=jnp.float32) + b3


@jax.jit
def qnetwork_forward(x, params):
    """x: [B, state_size] float32.  Returns Q-values [B, action_size] float32."""
    w1, b1, w2, b2, w3, b3 = params
    B, S = x.shape
    A = w3.shape[1]

    # Acting path: a [B<8, S] forward is a few hundred FLOPs; plain XLA wins.
    if B < _MIN_PALLAS_BATCH:
        return _forward_f32(x, params)

    # --- batch tiling (TB multiple of 16 for bf16 sublane packing) ---
    TB = min(_MAX_BATCH_TILE, _round_up(B, 16))
    B_pad = _round_up(B, TB)
    A_pad = _round_up(max(A, _LANE), _LANE)  # lane-dense output slab

    bf = jnp.bfloat16
    x_p = x.astype(bf)
    if B_pad != B:
        x_p = jnp.pad(x_p, ((0, B_pad - B), (0, 0)))
    w1_p = w1.astype(bf)
    w2_p = w2.astype(bf)
    w3_p = jnp.pad(w3, ((0, 0), (0, A_pad - A))).astype(bf)
    b3_p = jnp.pad(b3, ((0, 0), (0, A_pad - A)))

    grid = (B_pad // TB,)
    flops = 2 * B_pad * (S * _H1 + _H1 * _H2 + _H2 * A_pad)
    bytes_accessed = (x_p.size * 2
                      + (w1_p.size + w2_p.size + w3_p.size) * 2
                      + (b1.size + b2.size + b3_p.size) * 4
                      + B_pad * A_pad * 4)

    def _resident(arr):
        # Full-array block, same block index every grid step -> stays in VMEM.
        return pl.BlockSpec(arr.shape, lambda i: (0,) * arr.ndim)

    out = pl.pallas_call(
        _qnet_kernel,
        out_shape=jax.ShapeDtypeStruct((B_pad, A_pad), jnp.float32),
        grid=grid,
        in_specs=[
            pl.BlockSpec((TB, S), lambda i: (i, 0)),   # x batch tile
            _resident(w1_p), _resident(b1),
            _resident(w2_p), _resident(b2),
            _resident(w3_p), _resident(b3_p),
        ],
        out_specs=pl.BlockSpec((TB, A_pad), lambda i: (i, 0)),
        compiler_params=pltpu.CompilerParams(
            dimension_semantics=("parallel",)),
        cost_estimate=pl.CostEstimate(
            flops=flops, transcendentals=0, bytes_accessed=bytes_accessed),
    )(x_p, w1_p, b1, w2_p, b2, w3_p, b3_p)

    return out[:B, :A]


def init_qnetwork_params(key, state_size, action_size):
    """PyTorch nn.Linear default init: U(-1/sqrt(fan_in), 1/sqrt(fan_in))."""
    dims = [(state_size, _H1), (_H1, _H2), (_H2, action_size)]
    params = []
    for fan_in, fan_out in dims:
        key, kw, kb = jax.random.split(key, 3)
        bound = 1.0 / jnp.sqrt(jnp.float32(fan_in))
        w = jax.random.uniform(kw, (fan_in, fan_out), jnp.float32, -bound, bound)
        b = jax.random.uniform(kb, (1, fan_out), jnp.float32, -bound, bound)
        params.extend([w, b])
    return tuple(params)


if __name__ == "__main__":
    key = jax.random.PRNGKey(0)
    state_size, action_size = 8, 4

    key, kp = jax.random.split(key)
    params = init_qnetwork_params(kp, state_size, action_size)

    # 1) Pallas path: training-sized batch, exercises the tiled kernel.
    key, kx = jax.random.split(key)
    x_big = jax.random.normal(kx, (256, state_size), dtype=jnp.float32)
    out_big = jax.block_until_ready(qnetwork_forward(x_big, params))
    assert out_big.shape == (256, action_size)
    assert jnp.allclose(out_big, _forward_bf16_ref(x_big, params),
                        atol=1e-3, rtol=1e-3)
    assert jnp.allclose(out_big, _forward_f32(x_big, params),
                        atol=5e-2, rtol=5e-2)

    # 2) Pallas path with a non-aligned batch (padding + slice-back check).
    key, kx = jax.random.split(key)
    x_odd = jax.random.normal(kx, (37, state_size), dtype=jnp.float32)
    out_odd = jax.block_until_ready(qnetwork_forward(x_odd, params))
    assert out_odd.shape == (37, action_size)
    assert jnp.allclose(out_odd, _forward_bf16_ref(x_odd, params),
                        atol=1e-3, rtol=1e-3)

    # 3) Tiny acting batch (B=2): pure-JAX bypass path, exact f32 semantics.
    key, kx = jax.random.split(key)
    x_small = jax.random.normal(kx, (2, state_size), dtype=jnp.float32)
    out_small = jax.block_until_ready(qnetwork_forward(x_small, params))
    assert out_small.shape == (2, action_size)
    assert jnp.allclose(out_small, _forward_f32(x_small, params),
                        atol=1e-5, rtol=1e-5)

    print("KERNEL_OK")
</pallas_src>

<mosaic_0001>
module attributes {stable_mosaic.version = 11 : i64} {
  func.func @_qnet_kernel(%arg0: i32, %arg1: memref<256x8xbf16, #tpu.memory_space<vmem>>, %arg2: memref<8x256xbf16, #tpu.memory_space<vmem>>, %arg3: memref<1x256xf32, #tpu.memory_space<vmem>>, %arg4: memref<256x128xbf16, #tpu.memory_space<vmem>>, %arg5: memref<1x128xf32, #tpu.memory_space<vmem>>, %arg6: memref<128x128xbf16, #tpu.memory_space<vmem>>, %arg7: memref<1x128xf32, #tpu.memory_space<vmem>>, %arg8: memref<256x128xf32, #tpu.memory_space<vmem>>) attributes {dimension_semantics = [#tpu.dimension_semantics<parallel>], iteration_bounds = array<i64: 1>, scalar_prefetch = 0 : i64, scratch_operands = 0 : i64, tpu.core_type = #tpu.core_type<tc>, window_params = [{transform_indices = @transform_0, window_bounds = array<i64: 256, 8>}, {pipeline_mode = #tpu.pipeline_mode<synchronous>, transform_indices = @transform_1, window_bounds = array<i64: 8, 256>}, {pipeline_mode = #tpu.pipeline_mode<synchronous>, transform_indices = @transform_2, window_bounds = array<i64: 1, 256>}, {pipeline_mode = #tpu.pipeline_mode<synchronous>, transform_indices = @transform_3, window_bounds = array<i64: 256, 128>}, {pipeline_mode = #tpu.pipeline_mode<synchronous>, transform_indices = @transform_4, window_bounds = array<i64: 1, 128>}, {pipeline_mode = #tpu.pipeline_mode<synchronous>, transform_indices = @transform_5, window_bounds = array<i64: 128, 128>}, {pipeline_mode = #tpu.pipeline_mode<synchronous>, transform_indices = @transform_6, window_bounds = array<i64: 1, 128>}, {transform_indices = @transform_7, window_bounds = array<i64: 256, 128>}]} {
    %c0 = arith.constant 0 : index
    %c0_0 = arith.constant 0 : index
    %0 = vector.load %arg1[%c0, %c0_0] : memref<256x8xbf16, #tpu.memory_space<vmem>>, vector<256x8xbf16>
    %c0_1 = arith.constant 0 : index
    %c0_2 = arith.constant 0 : index
    %1 = vector.load %arg2[%c0_1, %c0_2] : memref<8x256xbf16, #tpu.memory_space<vmem>>, vector<8x256xbf16>
    %cst = arith.constant dense<0.000000e+00> : vector<256x256xf32>
    %2 = tpu.matmul %0, %1, %cst {dimension_numbers = #tpu.dot_dimension_numbers<[1], [0], [0], [1], [0, 0, 1, 1], [], []>} : vector<256x8xbf16>, vector<8x256xbf16>, vector<256x256xf32> -> vector<256x256xf32>
    %c0_3 = arith.constant 0 : index
    %c0_4 = arith.constant 0 : index
    %3 = vector.load %arg3[%c0_3, %c0_4] : memref<1x256xf32, #tpu.memory_space<vmem>>, vector<1x256xf32>
    %4 = vector.broadcast %3 : vector<1x256xf32> to vector<256x256xf32>
    %5 = arith.addf %2, %4 : vector<256x256xf32>
    %cst_5 = arith.constant 0.000000e+00 : f32
    %6 = vector.broadcast %cst_5 : f32 to vector<256x256xf32>
    %7 = arith.maximumf %5, %6 : vector<256x256xf32>
    %8 = arith.truncf %7 : vector<256x256xf32> to vector<256x256xbf16>
    %c0_6 = arith.constant 0 : index
    %c0_7 = arith.constant 0 : index
    %9 = vector.load %arg4[%c0_6, %c0_7] : memref<256x128xbf16, #tpu.memory_space<vmem>>, vector<256x128xbf16>
    %cst_8 = arith.constant dense<0.000000e+00> : vector<256x128xf32>
    %10 = tpu.matmul %8, %9, %cst_8 {dimension_numbers = #tpu.dot_dimension_numbers<[1], [0], [0], [1], [0, 0, 1, 1], [], []>} : vector<256x256xbf16>, vector<256x128xbf16>, vector<256x128xf32> -> vector<256x128xf32>
    %c0_9 = arith.constant 0 : index
    %c0_10 = arith.constant 0 : index
    %11 = vector.load %arg5[%c0_9, %c0_10] : memref<1x128xf32, #tpu.memory_space<vmem>>, vector<1x128xf32>
    %12 = vector.broadcast %11 : vector<1x128xf32> to vector<256x128xf32>
    %13 = arith.addf %10, %12 : vector<256x128xf32>
    %cst_11 = arith.constant 0.000000e+00 : f32
    %14 = vector.broadcast %cst_11 : f32 to vector<256x128xf32>
    %15 = arith.maximumf %13, %14 : vector<256x128xf32>
    %16 = arith.truncf %15 : vector<256x128xf32> to vector<256x128xbf16>
    %c0_12 = arith.constant 0 : index
    %c0_13 = arith.constant 0 : index
    %17 = vector.load %arg6[%c0_12, %c0_13] : memref<128x128xbf16, #tpu.memory_space<vmem>>, vector<128x128xbf16>
    %cst_14 = arith.constant dense<0.000000e+00> : vector<256x128xf32>
    %18 = tpu.matmul %16, %17, %cst_14 {dimension_numbers = #tpu.dot_dimension_numbers<[1], [0], [0], [1], [0, 0, 1, 1], [], []>} : vector<256x128xbf16>, vector<128x128xbf16>, vector<256x128xf32> -> vector<256x128xf32>
    %c0_15 = arith.constant 0 : index
    %c0_16 = arith.constant 0 : index
    %19 = vector.load %arg7[%c0_15, %c0_16] : memref<1x128xf32, #tpu.memory_space<vmem>>, vector<1x128xf32>
    %20 = vector.broadcast %19 : vector<1x128xf32> to vector<256x128xf32>
    %21 = arith.addf %18, %20 : vector<256x128xf32>
    %c0_17 = arith.constant 0 : index
    %c0_18 = arith.constant 0 : index
    %22 = vector.load %arg8[%c0_17, %c0_18] : memref<256x128xf32, #tpu.memory_space<vmem>>, vector<256x128xf32>
    tpu.vector_store %arg8[%c0_17, %c0_18], %21 {strides = array<i32>} : memref<256x128xf32, #tpu.memory_space<vmem>>, vector<256x128xf32>,
    return
  }
  func.func @transform_0(%arg0: i32) -> (i32, i32) {
    %c0_i32 = arith.constant 0 : i32
    %c0_i32_0 = arith.constant 0 : i32
    return %arg0, %c0_i32 : i32, i32
  }
  func.func @transform_1(%arg0: i32) -> (i32, i32) {
    %c0_i32 = arith.constant 0 : i32
    %c0_i32_0 = arith.constant 0 : i32
    %c0_i32_1 = arith.constant 0 : i32
    return %c0_i32, %c0_i32_0 : i32, i32
  }
  func.func @transform_2(%arg0: i32) -> (i32, i32) {
    %c0_i32 = arith.constant 0 : i32
    %c0_i32_0 = arith.constant 0 : i32
    %c0_i32_1 = arith.constant 0 : i32
    return %c0_i32, %c0_i32_0 : i32, i32
  }
  func.func @transform_3(%arg0: i32) -> (i32, i32) {
    %c0_i32 = arith.constant 0 : i32
    %c0_i32_0 = arith.constant 0 : i32
    %c0_i32_1 = arith.constant 0 : i32
    return %c0_i32, %c0_i32_0 : i32, i32
  }
  func.func @transform_4(%arg0: i32) -> (i32, i32) {
    %c0_i32 = arith.constant 0 : i32
    %c0_i32_0 = arith.constant 0 : i32
    %c0_i32_1 = arith.constant 0 : i32
    return %c0_i32, %c0_i32_0 : i32, i32
  }
  func.func @transform_5(%arg0: i32) -> (i32, i32) {
    %c0_i32 = arith.constant 0 : i32
    %c0_i32_0 = arith.constant 0 : i32
    %c0_i32_1 = arith.constant 0 : i32
    return %c0_i32, %c0_i32_0 : i32, i32
  }
  func.func @transform_6(%arg0: i32) -> (i32, i32) {
    %c0_i32 = arith.constant 0 : i32
    %c0_i32_0 = arith.constant 0 : i32
    %c0_i32_1 = arith.constant 0 : i32
    return %c0_i32, %c0_i32_0 : i32, i32
  }
  func.func @transform_7(%arg0: i32) -> (i32, i32) {
    %c0_i32 = arith.constant 0 : i32
    %c0_i32_0 = arith.constant 0 : i32
    return %arg0, %c0_i32 : i32, i32
  }
}

</mosaic_0001>

<llo_original>
// kernel: qnetwork_forward.1
$region0: #{qnetwork_forward.1}
  #allocation0 [shape = 'u32[]', space=smem, size = 0x4, offset = 0x4, fixed_abs, tag = 'smem constant byte address 0x4 - core index']
  #allocation1 [shape = 'u32[144,128]{1,0:T(1,128)}', space=vmem, size = 0x12000, scoped, tag = 'internal scratch']
  %s0 = inlined_call_operand.vmem [shape: bf16[256,8], index: 0, kind: input, shape index: {}]
  %s1 = inlined_call_operand.vmem [shape: bf16[8,256], index: 1, kind: input, shape index: {}]
  %s2 = inlined_call_operand.vmem [shape: f32[1,256], index: 2, kind: input, shape index: {}]
  %s3 = inlined_call_operand.vmem [shape: bf16[256,128], index: 3, kind: input, shape index: {}]
  %s4 = inlined_call_operand.vmem [shape: f32[1,128], index: 4, kind: input, shape index: {}]
  %s5 = inlined_call_operand.vmem [shape: bf16[128,128], index: 5, kind: input, shape index: {}]
  %s6 = inlined_call_operand.vmem [shape: f32[1,128], index: 6, kind: input, shape index: {}]
  %s7 = inlined_call_operand.vmem [shape: f32[256,128], index: 7, kind: output, shape index: {}]
  %s8 = sld [smem:[#allocation0]]
  $region38: #{qnetwork_forward.1} parent=0
    _
  %s10 = ssub.s32 1, %s8
  %s11 = scalar_select 0, %s10, %s8
  // Predicated region
  $region2: #{qnetwork_forward.1} parent=0 // pred_check
    _
  $region3: #{qnetwork_forward.1} parent=0 // pred_check_branch
    %13 = sbr.rel (0) target = $region5
  $region4: #{qnetwork_forward.1} parent=0 // pred_region
    _
  $region5: #{qnetwork_forward.1} parent=0 // pred_fallthru
    _
  // Predicated region
  $region6: #{qnetwork_forward.1} parent=0 // pred_check
    _
  $region7: #{qnetwork_forward.1} parent=0 // pred_check_branch
    %15 = sbr.rel (0) target = $region9
  $region8: #{qnetwork_forward.1} parent=0 // pred_region
    _
  $region9: #{qnetwork_forward.1} parent=0 // pred_fallthru
    _
  // Predicated region
  $region10: #{qnetwork_forward.1} parent=0 // pred_check
    _
  $region11: #{qnetwork_forward.1} parent=0 // pred_check_branch
    %17 = sbr.rel (0) target = $region13
  $region12: #{qnetwork_forward.1} parent=0 // pred_region
    _
  $region13: #{qnetwork_forward.1} parent=0 // pred_fallthru
    _
  // Predicated region
  $region14: #{qnetwork_forward.1} parent=0 // pred_check
    _
  $region15: #{qnetwork_forward.1} parent=0 // pred_check_branch
    %19 = sbr.rel (0) target = $region17
  $region16: #{qnetwork_forward.1} parent=0 // pred_region
    _
  $region17: #{qnetwork_forward.1} parent=0 // pred_fallthru
    _
  // Predicated region
  $region18: #{qnetwork_forward.1} parent=0 // pred_check
    _
  $region19: #{qnetwork_forward.1} parent=0 // pred_check_branch
    %21 = sbr.rel (0) target = $region21
  $region20: #{qnetwork_forward.1} parent=0 // pred_region
    _
  $region21: #{qnetwork_forward.1} parent=0 // pred_fallthru
    _
  // Predicated region
  $region22: #{qnetwork_forward.1} parent=0 // pred_check
    _
  $region23: #{qnetwork_forward.1} parent=0 // pred_check_branch
    %23 = sbr.rel (0) target = $region25
  $region24: #{qnetwork_forward.1} parent=0 // pred_region
    _
  $region25: #{qnetwork_forward.1} parent=0 // pred_fallthru
    _
  // Predicated region
  $region26: #{qnetwork_forward.1} parent=0 // pred_check
    _
  $region27: #{qnetwork_forward.1} parent=0 // pred_check_branch
    %25 = sbr.rel (0) target = $region29
  $region28: #{qnetwork_forward.1} parent=0 // pred_region
    _
  $region29: #{qnetwork_forward.1} parent=0 // pred_fallthru
    _
  %v27 = vld [vmem:[%s0] sm:$0xf]
  %v28 = vld [vmem:[%s0 + $0x4] sm:$0xf]
  %v29 = vld [vmem:[%s0 + $0x8] sm:$0xf]
  %v30 = vld [vmem:[%s0 + $0xc] sm:$0xf]
  %v31 = vld [vmem:[%s0 + $0x10] sm:$0xf]
  %v32 = vld [vmem:[%s0 + $0x14] sm:$0xf]
  %v33 = vld [vmem:[%s0 + $0x18] sm:$0xf]
  %v34 = vld [vmem:[%s0 + $0x1c] sm:$0xf]
  %v35 = vld [vmem:[%s0 + $0x20] sm:$0xf]
  %v36 = vld [vmem:[%s0 + $0x24] sm:$0xf]
  %v37 = vld [vmem:[%s0 + $0x28] sm:$0xf]
  %v38 = vld [vmem:[%s0 + $0x2c] sm:$0xf]
  %v39 = vld [vmem:[%s0 + $0x30] sm:$0xf]
  %v40 = vld [vmem:[%s0 + $0x34] sm:$0xf]
  %v41 = vld [vmem:[%s0 + $0x38] sm:$0xf]
  %v42 = vld [vmem:[%s0 + $0x3c] sm:$0xf]
  %v43 = vld [vmem:[%s0 + $0x40] sm:$0xf]
  %v44 = vld [vmem:[%s0 + $0x44] sm:$0xf]
  %v45 = vld [vmem:[%s0 + $0x48] sm:$0xf]
  %v46 = vld [vmem:[%s0 + $0x4c] sm:$0xf]
  %v47 = vld [vmem:[%s0 + $0x50] sm:$0xf]
  %v48 = vld [vmem:[%s0 + $0x54] sm:$0xf]
  %v49 = vld [vmem:[%s0 + $0x58] sm:$0xf]
  %v50 = vld [vmem:[%s0 + $0x5c] sm:$0xf]
  %v51 = vld [vmem:[%s0 + $0x60] sm:$0xf]
  %v52 = vld [vmem:[%s0 + $0x64] sm:$0xf]
  %v53 = vld [vmem:[%s0 + $0x68] sm:$0xf]
  %v54 = vld [vmem:[%s0 + $0x6c] sm:$0xf]
  %v55 = vld [vmem:[%s0 + $0x70] sm:$0xf]
  %v56 = vld [vmem:[%s0 + $0x74] sm:$0xf]
  %v57 = vld [vmem:[%s0 + $0x78] sm:$0xf]
  %v58 = vld [vmem:[%s0 + $0x7c] sm:$0xf]
  %v59 = vld [vmem:[%s1] sm:$0xff]
  %v60 = vld [vmem:[%s2] sm:$0x3]
  %v62 = vlaneseq
  %v63 = vshrl.u32 %v62, 7
  %v64 = vsub.s32 0, %v63
  %v65 = vrot.slane %v60, %v64
  %v66 = vlaneseq
  %v67 = vshrl.u32 %v66, 7
  %v68 = vsub.s32 1, %v67
  %v69 = vrot.slane %v60, %v68
  %v104 = vunpack.c.l.b16 %v27
  %v105 = vunpack.c.l.b16 %v28
  %v106 = vunpack.c.l.b16 %v29
  %v107 = vunpack.c.l.b16 %v30
  %v108 = vunpack.c.l.b16 %v31
  %v109 = vunpack.c.l.b16 %v32
  %v110 = vunpack.c.l.b16 %v33
  %v111 = vunpack.c.l.b16 %v34
  %v112 = vunpack.c.l.b16 %v35
  %v113 = vunpack.c.l.b16 %v36
  %v114 = vunpack.c.l.b16 %v37
  %v115 = vunpack.c.l.b16 %v38
  %v116 = vunpack.c.l.b16 %v39
  %v117 = vunpack.c.l.b16 %v40
  %v118 = vunpack.c.l.b16 %v41
  %v119 = vunpack.c.l.b16 %v42
  %v120 = vunpack.c.l.b16 %v43
  %v121 = vunpack.c.l.b16 %v44
  %v122 = vunpack.c.l.b16 %v45
  %v123 = vunpack.c.l.b16 %v46
  %v124 = vunpack.c.l.b16 %v47
  %v125 = vunpack.c.l.b16 %v48
  %v126 = vunpack.c.l.b16 %v49
  %v127 = vunpack.c.l.b16 %v50
  %v128 = vunpack.c.l.b16 %v51
  %v129 = vunpack.c.l.b16 %v52
  %v130 = vunpack.c.l.b16 %v53
  %v131 = vunpack.c.l.b16 %v54
  %v132 = vunpack.c.l.b16 %v55
  %v133 = vunpack.c.l.b16 %v56
  %v134 = vunpack.c.l.b16 %v57
  %v135 = vunpack.c.l.b16 %v58
  %v136 = vpack.c.b16 %v105, %v104
  %v137 = vpack.c.b16 %v107, %v106
  %v138 = vpack.c.b16 %v109, %v108
  %v139 = vpack.c.b16 %v111, %v110
  %v140 = vpack.c.b16 %v113, %v112
  %v141 = vpack.c.b16 %v115, %v114
  %v142 = vpack.c.b16 %v117, %v116
  %v143 = vpack.c.b16 %v119, %v118
  %v144 = vpack.c.b16 %v121, %v120
  %v145 = vpack.c.b16 %v123, %v122
  %v146 = vpack.c.b16 %v125, %v124
  %v147 = vpack.c.b16 %v127, %v126
  %v148 = vpack.c.b16 %v129, %v128
  %v149 = vpack.c.b16 %v131, %v130
  %v150 = vpack.c.b16 %v133, %v132
  %v151 = vpack.c.b16 %v135, %v134
  %v153 = vunpack.c.l.b16 %v59
  %v154 = vunpack.c.h.b16 %v59
  %v155 = vpack.c.b16 %v153, %v153
  %v156 = vpack.c.b16 %v154, %v154
  %vm157 = vcmask 64512
  %v159 = vsel %vm157, %v136, 0
  %v162 = vsel %vm157, %v137, 0
  %v165 = vsel %vm157, %v138, 0
  %v168 = vsel %vm157, %v139, 0
  %v171 = vsel %vm157, %v140, 0
  %v174 = vsel %vm157, %v141, 0
  %v177 = vsel %vm157, %v142, 0
  %v180 = vsel %vm157, %v143, 0
  %v183 = vsel %vm157, %v144, 0
  %v186 = vsel %vm157, %v145, 0
  %v189 = vsel %vm157, %v146, 0
  %v192 = vsel %vm157, %v147, 0
  %v195 = vsel %vm157, %v148, 0
  %v198 = vsel %vm157, %v149, 0
  %v201 = vsel %vm157, %v150, 0
  %v204 = vsel %vm157, %v151, 0
  %vm206 = vcmask 1043456
  %v208 = vsel %vm206, %v155, 0
  %v211 = vsel %vm206, %v156, 0
  %213 = vmatprep.subr.bf16.mxu0 %v211
  %214 = vmatpush1.bf16.msra.mxu0 %v208
  %215 = vmatprep.subr.bf16.mxu0 0
  %216 = vmatpush1.bf16.msra.mxu0 0
  %217 = vmatprep.subr.bf16.mxu0 0
  %218 = vmatpush1.bf16.msra.mxu0 0
  %219 = vmatprep.subr.bf16.mxu0 0
  %220 = vmatpush1.bf16.msra.mxu0 0
  %221 = vmatprep.subr.bf16.mxu0 0
  %222 = vmatpush1.bf16.msra.mxu0 0
  %223 = vmatprep.subr.bf16.mxu0 0
  %224 = vmatpush1.bf16.msra.mxu0 0
  %225 = vmatprep.subr.bf16.mxu0 0
  %226 = vmatpush1.bf16.msra.mxu0 0
  %227 = vmatprep.subr.bf16.mxu0 0
  %228 = vmatpush1.bf16.msra.mxu0 0
  %229 = vmatprep.subr.bf16.mxu0 0
  %230 = vmatpush1.bf16.msra.mxu0 0
  %231 = vmatprep.subr.bf16.mxu0 0
  %232 = vmatpush1.bf16.msra.mxu0 0
  %233 = vmatprep.subr.bf16.mxu0 0
  %234 = vmatpush1.bf16.msra.mxu0 0
  %235 = vmatprep.subr.bf16.mxu0 0
  %236 = vmatpush1.bf16.msra.mxu0 0
  %237 = vmatprep.subr.bf16.mxu0 0
  %238 = vmatpush1.bf16.msra.mxu0 0
  %239 = vmatprep.subr.bf16.mxu0 0
  %240 = vmatpush1.bf16.msra.mxu0 0
  %241 = vmatprep.subr.bf16.mxu0 0
  %242 = vmatpush1.bf16.msra.mxu0 0
  %243 = vmatprep.subr.bf16.mxu0 0
  %244 = vmatpush1.bf16.msra.mxu0 0
  %245 = vmatprep.mubr.bf16.mxu0 0
  %246 = vmatmul.mubr.bf16.gmra.mrb[0].mxu0 %v159
  %v247 = vpop.f32.mrb[0].mxu0
  %v248 = vadd.f32 %v65, %v247
  %v249 = vpop.f32.mrb[0].mxu0
  %v250 = vadd.f32 %v69, %v249
  %v251 = vpop.f32.mrb[0].mxu0
  %v252 = vadd.f32 %v65, %v251
  %v253 = vpop.f32.mrb[0].mxu0
  %v254 = vadd.f32 %v69, %v253
  %255 = vmatprep.mubr.bf16.mxu0 0
  %256 = vmatmul.mubr.bf16.gmra.mrb[0].mxu0 %v162
  %v257 = vpop.f32.mrb[0].mxu0
  %v258 = vadd.f32 %v65, %v257
  %v259 = vpop.f32.mrb[0].mxu0
  %v260 = vadd.f32 %v69, %v259
  %v261 = vpop.f32.mrb[0].mxu0
  %v262 = vadd.f32 %v65, %v261
  %v263 = vpop.f32.mrb[0].mxu0
  %v264 = vadd.f32 %v69, %v263
  %265 = vmatprep.mubr.bf16.mxu0 0
  %266 = vmatmul.mubr.bf16.gmra.mrb[0].mxu0 %v165
  %v267 = vpop.f32.mrb[0].mxu0
  %v268 = vadd.f32 %v65, %v267
  %v269 = vpop.f32.mrb[0].mxu0
  %v270 = vadd.f32 %v69, %v269
  %v271 = vpop.f32.mrb[0].mxu0
  %v272 = vadd.f32 %v65, %v271
  %v273 = vpop.f32.mrb[0].mxu0
  %v274 = vadd.f32 %v69, %v273
  %275 = vmatprep.mubr.bf16.mxu0 0
  %276 = vmatmul.mubr.bf16.gmra.mrb[0].mxu0 %v168
  %v277 = vpop.f32.mrb[0].mxu0
  %v278 = vadd.f32 %v65, %v277
  %v279 = vpop.f32.mrb[0].mxu0
  %v280 = vadd.f32 %v69, %v279
  %v281 = vpop.f32.mrb[0].mxu0
  %v282 = vadd.f32 %v65, %v281
  %v283 = vpop.f32.mrb[0].mxu0
  %v284 = vadd.f32 %v69, %v283
  %285 = vmatprep.mubr.bf16.mxu0 0
  %286 = vmatmul.mubr.bf16.gmra.mrb[0].mxu0 %v171
  %v287 = vpop.f32.mrb[0].mxu0
  %v288 = vadd.f32 %v65, %v287
  %v289 = vpop.f32.mrb[0].mxu0
  %v290 = vadd.f32 %v69, %v289
  %v291 = vpop.f32.mrb[0].mxu0
  %v292 = vadd.f32 %v65, %v291
  %v293 = vpop.f32.mrb[0].mxu0
  %v294 = vadd.f32 %v69, %v293
  %295 = vmatprep.mubr.bf16.mxu0 0
  %296 = vmatmul.mubr.bf16.gmra.mrb[0].mxu0 %v174
  %v297 = vpop.f32.mrb[0].mxu0
  %v298 = vadd.f32 %v65, %v297
  %v299 = vpop.f32.mrb[0].mxu0
  %v300 = vadd.f32 %v69, %v299
  %v301 = vpop.f32.mrb[0].mxu0
  %v302 = vadd.f32 %v65, %v301
  %v303 = vpop.f32.mrb[0].mxu0
  %v304 = vadd.f32 %v69, %v303
  %305 = vmatprep.mubr.bf16.mxu0 0
  %306 = vmatmul.mubr.bf16.gmra.mrb[0].mxu0 %v177
  %v307 = vpop.f32.mrb[0].mxu0
  %v308 = vadd.f32 %v65, %v307
  %v309 = vpop.f32.mrb[0].mxu0
  %v310 = vadd.f32 %v69, %v309
  %v311 = vpop.f32.mrb[0].mxu0
  %v312 = vadd.f32 %v65, %v311
  %v313 = vpop.f32.mrb[0].mxu0
  %v314 = vadd.f32 %v69, %v313
  %315 = vmatprep.mubr.bf16.mxu0 0
  %316 = vmatmul.mubr.bf16.gmra.mrb[0].mxu0 %v180
  %v317 = vpop.f32.mrb[0].mxu0
  %v318 = vadd.f32 %v65, %v317
  %v319 = vpop.f32.mrb[0].mxu0
  %v320 = vadd.f32 %v69, %v319
  %v321 = vpop.f32.mrb[0].mxu0
  %v322 = vadd.f32 %v65, %v321
  %v323 = vpop.f32.mrb[0].mxu0
  %v324 = vadd.f32 %v69, %v323
  %325 = vmatprep.mubr.bf16.mxu0 0
  %326 = vmatmul.mubr.bf16.gmra.mrb[0].mxu0 %v183
  %v327 = vpop.f32.mrb[0].mxu0
  %v328 = vadd.f32 %v65, %v327
  %v329 = vpop.f32.mrb[0].mxu0
  %v330 = vadd.f32 %v69, %v329
  %v331 = vpop.f32.mrb[0].mxu0
  %v332 = vadd.f32 %v65, %v331
  %v333 = vpop.f32.mrb[0].mxu0
  %v334 = vadd.f32 %v69, %v333
  %335 = vmatprep.mubr.bf16.mxu0 0
  %336 = vmatmul.mubr.bf16.gmra.mrb[0].mxu0 %v186
  %v337 = vpop.f32.mrb[0].mxu0
  %v338 = vadd.f32 %v65, %v337
  %v339 = vpop.f32.mrb[0].mxu0
  %v340 = vadd.f32 %v69, %v339
  %v341 = vpop.f32.mrb[0].mxu0
  %v342 = vadd.f32 %v65, %v341
  %v343 = vpop.f32.mrb[0].mxu0
  %v344 = vadd.f32 %v69, %v343
  %345 = vmatprep.mubr.bf16.mxu0 0
  %346 = vmatmul.mubr.bf16.gmra.mrb[0].mxu0 %v189
  %v347 = vpop.f32.mrb[0].mxu0
  %v348 = vadd.f32 %v65, %v347
  %v349 = vpop.f32.mrb[0].mxu0
  %v350 = vadd.f32 %v69, %v349
  %v351 = vpop.f32.mrb[0].mxu0
  %v352 = vadd.f32 %v65, %v351
  %v353 = vpop.f32.mrb[0].mxu0
  %v354 = vadd.f32 %v69, %v353
  %355 = vmatprep.mubr.bf16.mxu0 0
  %356 = vmatmul.mubr.bf16.gmra.mrb[0].mxu0 %v192
  %v357 = vpop.f32.mrb[0].mxu0
  %v358 = vadd.f32 %v65, %v357
  %v359 = vpop.f32.mrb[0].mxu0
  %v360 = vadd.f32 %v69, %v359
  %v361 = vpop.f32.mrb[0].mxu0
  %v362 = vadd.f32 %v65, %v361
  %v363 = vpop.f32.mrb[0].mxu0
  %v364 = vadd.f32 %v69, %v363
  %365 = vmatprep.mubr.bf16.mxu0 0
  %366 = vmatmul.mubr.bf16.gmra.mrb[0].mxu0 %v195
  %v367 = vpop.f32.mrb[0].mxu0
  %v368 = vadd.f32 %v65, %v367
  %v369 = vpop.f32.mrb[0].mxu0
  %v370 = vadd.f32 %v69, %v369
  %v371 = vpop.f32.mrb[0].mxu0
  %v372 = vadd.f32 %v65, %v371
  %v373 = vpop.f32.mrb[0].mxu0
  %v374 = vadd.f32 %v69, %v373
  %375 = vmatprep.mubr.bf16.mxu0 0
  %376 = vmatmul.mubr.bf16.gmra.mrb[0].mxu0 %v198
  %v377 = vpop.f32.mrb[0].mxu0
  %v378 = vadd.f32 %v65, %v377
  %v379 = vpop.f32.mrb[0].mxu0
  %v380 = vadd.f32 %v69, %v379
  %v381 = vpop.f32.mrb[0].mxu0
  %v382 = vadd.f32 %v65, %v381
  %v383 = vpop.f32.mrb[0].mxu0
  %v384 = vadd.f32 %v69, %v383
  %385 = vmatprep.mubr.bf16.mxu0 0
  %386 = vmatmul.mubr.bf16.gmra.mrb[0].mxu0 %v201
  %v387 = vpop.f32.mrb[0].mxu0
  %v388 = vadd.f32 %v65, %v387
  %v389 = vpop.f32.mrb[0].mxu0
  %v390 = vadd.f32 %v69, %v389
  %v391 = vpop.f32.mrb[0].mxu0
  %v392 = vadd.f32 %v65, %v391
  %v393 = vpop.f32.mrb[0].mxu0
  %v394 = vadd.f32 %v69, %v393
  %395 = vmatprep.mubr.bf16.mxu0 0
  %396 = vmatmul.mubr.bf16.gmra.mrb[0].mxu0 %v204
  %v397 = vpop.f32.mrb[0].mxu0
  %v398 = vadd.f32 %v65, %v397
  %v399 = vpop.f32.mrb[0].mxu0
  %v400 = vadd.f32 %v69, %v399
  %v401 = vpop.f32.mrb[0].mxu0
  %v402 = vadd.f32 %v65, %v401
  %v403 = vpop.f32.mrb[0].mxu0
  %v404 = vadd.f32 %v69, %v403
  %405 = vdwg.mxu0
  %v406 = vmax.f32 %v248, 0.0
  %v407 = vmax.f32 %v250, 0.0
  %v408 = vmax.f32 %v252, 0.0
  %v409 = vmax.f32 %v254, 0.0
  %v410 = vmax.f32 %v258, 0.0
  %v411 = vmax.f32 %v260, 0.0
  %v412 = vmax.f32 %v262, 0.0
  %v413 = vmax.f32 %v264, 0.0
  %v414 = vmax.f32 %v268, 0.0
  %v415 = vmax.f32 %v270, 0.0
  %v416 = vmax.f32 %v272, 0.0
  %v417 = vmax.f32 %v274, 0.0
  %v418 = vmax.f32 %v278, 0.0
  %v419 = vmax.f32 %v280, 0.0
  %v420 = vmax.f32 %v282, 0.0
  %v421 = vmax.f32 %v284, 0.0
  %v422 = vmax.f32 %v288, 0.0
  %v423 = vmax.f32 %v290, 0.0
  %v424 = vmax.f32 %v292, 0.0
  %v425 = vmax.f32 %v294, 0.0
  %v426 = vmax.f32 %v298, 0.0
  %v427 = vmax.f32 %v300, 0.0
  %v428 = vmax.f32 %v302, 0.0
  %v429 = vmax.f32 %v304, 0.0
  %v430 = vmax.f32 %v308, 0.0
  %v431 = vmax.f32 %v310, 0.0
  %v432 = vmax.f32 %v312, 0.0
  %v433 = vmax.f32 %v314, 0.0
  %v434 = vmax.f32 %v318, 0.0
  %v435 = vmax.f32 %v320, 0.0
  %v436 = vmax.f32 %v322, 0.0
  %v437 = vmax.f32 %v324, 0.0
  %v438 = vmax.f32 %v328, 0.0
  %v439 = vmax.f32 %v330, 0.0
  %v440 = vmax.f32 %v332, 0.0
  %v441 = vmax.f32 %v334, 0.0
  %v442 = vmax.f32 %v338, 0.0
  %v443 = vmax.f32 %v340, 0.0
  %v444 = vmax.f32 %v342, 0.0
  %v445 = vmax.f32 %v344, 0.0
  %v446 = vmax.f32 %v348, 0.0
  %v447 = vmax.f32 %v350, 0.0
  %v448 = vmax.f32 %v352, 0.0
  %v449 = vmax.f32 %v354, 0.0
  %v450 = vmax.f32 %v358, 0.0
  %v451 = vmax.f32 %v360, 0.0
  %v452 = vmax.f32 %v362, 0.0
  %v453 = vmax.f32 %v364, 0.0
  %v454 = vmax.f32 %v368, 0.0
  %v455 = vmax.f32 %v370, 0.0
  %v456 = vmax.f32 %v372, 0.0
  %v457 = vmax.f32 %v374, 0.0
  %v458 = vmax.f32 %v378, 0.0
  %v459 = vmax.f32 %v380, 0.0
  %v460 = vmax.f32 %v382, 0.0
  %v461 = vmax.f32 %v384, 0.0
  %v462 = vmax.f32 %v388, 0.0
  %v463 = vmax.f32 %v390, 0.0
  %v464 = vmax.f32 %v392, 0.0
  %v465 = vmax.f32 %v394, 0.0
  %v466 = vmax.f32 %v398, 0.0
  %v467 = vmax.f32 %v400, 0.0
  %v468 = vmax.f32 %v402, 0.0
  %v469 = vmax.f32 %v404, 0.0
  %v470 = vpack.c.bf16 %v408, %v406
  %v471 = vpack.c.bf16 %v409, %v407
  %v472 = vpack.c.bf16 %v412, %v410
  %v473 = vpack.c.bf16 %v413, %v411
  %v474 = vpack.c.bf16 %v416, %v414
  %v475 = vpack.c.bf16 %v417, %v415
  %v476 = vpack.c.bf16 %v420, %v418
  %v477 = vpack.c.bf16 %v421, %v419
  %v478 = vpack.c.bf16 %v424, %v422
  %v479 = vpack.c.bf16 %v425, %v423
  %v480 = vpack.c.bf16 %v428, %v426
  %v481 = vpack.c.bf16 %v429, %v427
  %v482 = vpack.c.bf16 %v432, %v430
  %v483 = vpack.c.bf16 %v433, %v431
  %v484 = vpack.c.bf16 %v436, %v434
  %v485 = vpack.c.bf16 %v437, %v435
  %v486 = vpack.c.bf16 %v440, %v438
  %v487 = vpack.c.bf16 %v441, %v439
  %v488 = vpack.c.bf16 %v444, %v442
  %v489 = vpack.c.bf16 %v445, %v443
  %v490 = vpack.c.bf16 %v448, %v446
  %v491 = vpack.c.bf16 %v449, %v447
  %v492 = vpack.c.bf16 %v452, %v450
  %v493 = vpack.c.bf16 %v453, %v451
  %v494 = vpack.c.bf16 %v456, %v454
  %v495 = vpack.c.bf16 %v457, %v455
  %v496 = vpack.c.bf16 %v460, %v458
  %v497 = vpack.c.bf16 %v461, %v459
  %v498 = vpack.c.bf16 %v464, %v462
  %v499 = vpack.c.bf16 %v465, %v463
  %v500 = vpack.c.bf16 %v468, %v466
  %v501 = vpack.c.bf16 %v469, %v467
  %v502 = vld [vmem:[%s3] sm:$0xf]
  %v503 = vld [vmem:[%s3 + $0x4] sm:$0xf]
  %v504 = vld [vmem:[%s3 + $0x8] sm:$0xf]
  %v505 = vld [vmem:[%s3 + $0xc] sm:$0xf]
  %v506 = vld [vmem:[%s3 + $0x10] sm:$0xf]
  %v507 = vld [vmem:[%s3 + $0x14] sm:$0xf]
  %v508 = vld [vmem:[%s3 + $0x18] sm:$0xf]
  %v509 = vld [vmem:[%s3 + $0x1c] sm:$0xf]
  %v510 = vld [vmem:[%s3 + $0x20] sm:$0xf]
  %v511 = vld [vmem:[%s3 + $0x24] sm:$0xf]
  %v512 = vld [vmem:[%s3 + $0x28] sm:$0xf]
  %v513 = vld [vmem:[%s3 + $0x2c] sm:$0xf]
  %v514 = vld [vmem:[%s3 + $0x30] sm:$0xf]
  %v515 = vld [vmem:[%s3 + $0x34] sm:$0xf]
  %v516 = vld [vmem:[%s3 + $0x38] sm:$0xf]
  %v517 = vld [vmem:[%s3 + $0x3c] sm:$0xf]
  %v518 = vld [vmem:[%s3 + $0x40] sm:$0xf]
  %v519 = vld [vmem:[%s3 + $0x44] sm:$0xf]
  %v520 = vld [vmem:[%s3 + $0x48] sm:$0xf]
  %v521 = vld [vmem:[%s3 + $0x4c] sm:$0xf]
  %v522 = vld [vmem:[%s3 + $0x50] sm:$0xf]
  %v523 = vld [vmem:[%s3 + $0x54] sm:$0xf]
  %v524 = vld [vmem:[%s3 + $0x58] sm:$0xf]
  %v525 = vld [vmem:[%s3 + $0x5c] sm:$0xf]
  %v526 = vld [vmem:[%s3 + $0x60] sm:$0xf]
  %v527 = vld [vmem:[%s3 + $0x64] sm:$0xf]
  %v528 = vld [vmem:[%s3 + $0x68] sm:$0xf]
  %v529 = vld [vmem:[%s3 + $0x6c] sm:$0xf]
  %v530 = vld [vmem:[%s3 + $0x70] sm:$0xf]
  %v531 = vld [vmem:[%s3 + $0x74] sm:$0xf]
  %v532 = vld [vmem:[%s3 + $0x78] sm:$0xf]
  %v533 = vld [vmem:[%s3 + $0x7c] sm:$0xf]
  %v534 = vld [vmem:[%s4] sm:$0x1]
  %v536 = vlaneseq
  %v537 = vshrl.u32 %v536, 7
  %v538 = vsub.s32 0, %v537
  %v539 = vrot.slane %v534, %v538
  %v573 = vunpack.c.l.b16 %v502
  %v574 = vunpack.c.l.b16 %v503
  %v575 = vunpack.c.l.b16 %v504
  %v576 = vunpack.c.l.b16 %v505
  %v577 = vunpack.c.l.b16 %v506
  %v578 = vunpack.c.l.b16 %v507
  %v579 = vunpack.c.l.b16 %v508
  %v580 = vunpack.c.l.b16 %v509
  %v581 = vunpack.c.l.b16 %v510
  %v582 = vunpack.c.l.b16 %v511
  %v583 = vunpack.c.l.b16 %v512
  %v584 = vunpack.c.l.b16 %v513
  %v585 = vunpack.c.l.b16 %v514
  %v586 = vunpack.c.l.b16 %v515
  %v587 = vunpack.c.l.b16 %v516
  %v588 = vunpack.c.l.b16 %v517
  %v589 = vunpack.c.l.b16 %v518
  %v590 = vunpack.c.l.b16 %v519
  %v591 = vunpack.c.l.b16 %v520
  %v592 = vunpack.c.l.b16 %v521
  %v593 = vunpack.c.l.b16 %v522
  %v594 = vunpack.c.l.b16 %v523
  %v595 = vunpack.c.l.b16 %v524
  %v596 = vunpack.c.l.b16 %v525
  %v597 = vunpack.c.l.b16 %v526
  %v598 = vunpack.c.l.b16 %v527
  %v599 = vunpack.c.l.b16 %v528
  %v600 = vunpack.c.l.b16 %v529
  %v601 = vunpack.c.l.b16 %v530
  %v602 = vunpack.c.l.b16 %v531
  %v603 = vunpack.c.l.b16 %v532
  %v604 = vunpack.c.l.b16 %v533
  %v605 = vpack.c.b16 %v574, %v573
  %v606 = vpack.c.b16 %v576, %v575
  %v607 = vpack.c.b16 %v578, %v577
  %v608 = vpack.c.b16 %v580, %v579
  %v609 = vpack.c.b16 %v582, %v581
  %v610 = vpack.c.b16 %v584, %v583
  %v611 = vpack.c.b16 %v586, %v585
  %v612 = vpack.c.b16 %v588, %v587
  %v613 = vpack.c.b16 %v590, %v589
  %v614 = vpack.c.b16 %v592, %v591
  %v615 = vpack.c.b16 %v594, %v593
  %v616 = vpack.c.b16 %v596, %v595
  %v617 = vpack.c.b16 %v598, %v597
  %v618 = vpack.c.b16 %v600, %v599
  %v619 = vpack.c.b16 %v602, %v601
  %v620 = vpack.c.b16 %v604, %v603
  %637 = vmatprep.subr.bf16.mxu0 0
  %638 = vmatpush1.bf16.msra.mxu0 %v605
  %639 = vmatprep.subr.bf16.mxu0 0
  %640 = vmatpush1.bf16.msra.mxu0 %v606
  %641 = vmatprep.subr.bf16.mxu0 0
  %642 = vmatpush1.bf16.msra.mxu0 %v607
  %643 = vmatprep.subr.bf16.mxu0 0
  %644 = vmatpush1.bf16.msra.mxu0 %v608
  %645 = vmatprep.subr.bf16.mxu0 0
  %646 = vmatpush1.bf16.msra.mxu0 %v609
  %647 = vmatprep.subr.bf16.mxu0 0
  %648 = vmatpush1.bf16.msra.mxu0 %v610
  %649 = vmatprep.subr.bf16.mxu0 0
  %650 = vmatpush1.bf16.msra.mxu0 %v611
  %651 = vmatprep.subr.bf16.mxu0 0
  %652 = vmatpush1.bf16.msra.mxu0 %v612
  %653 = vmatprep.subr.bf16.mxu0 0
  %654 = vmatpush1.bf16.msra.mxu0 %v613
  %655 = vmatprep.subr.bf16.mxu0 0
  %656 = vmatpush1.bf16.msra.mxu0 %v614
  %657 = vmatprep.subr.bf16.mxu0 0
  %658 = vmatpush1.bf16.msra.mxu0 %v615
  %659 = vmatprep.subr.bf16.mxu0 0
  %660 = vmatpush1.bf16.msra.mxu0 %v616
  %661 = vmatprep.subr.bf16.mxu0 0
  %662 = vmatpush1.bf16.msra.mxu0 %v617
  %663 = vmatprep.subr.bf16.mxu0 0
  %664 = vmatpush1.bf16.msra.mxu0 %v618
  %665 = vmatprep.subr.bf16.mxu0 0
  %666 = vmatpush1.bf16.msra.mxu0 %v619
  %667 = vmatprep.subr.bf16.mxu0 0
  %668 = vmatpush1.bf16.msra.mxu0 %v620
  %669 = vmatprep.mubr.bf16.mxu0 %v471
  %670 = vmatmul.mubr.bf16.gmra.mrb[0].mxu0 %v470
  %v671 = vpop.f32.mrb[0].mxu0
  %v672 = vadd.f32 %v539, %v671
  %v673 = vpop.f32.mrb[0].mxu0
  %v674 = vpop.f32.mrb[0].mxu0
  %v675 = vadd.f32 %v539, %v674
  %v676 = vpop.f32.mrb[0].mxu0
  %677 = vmatprep.mubr.bf16.mxu0 %v473
  %678 = vmatmul.mubr.bf16.gmra.mrb[0].mxu0 %v472
  %v679 = vpop.f32.mrb[0].mxu0
  %v680 = vadd.f32 %v539, %v679
  %v681 = vpop.f32.mrb[0].mxu0
  %v682 = vpop.f32.mrb[0].mxu0
  %v683 = vadd.f32 %v539, %v682
  %v684 = vpop.f32.mrb[0].mxu0
  %685 = vmatprep.mubr.bf16.mxu0 %v475
  %686 = vmatmul.mubr.bf16.gmra.mrb[0].mxu0 %v474
  %v687 = vpop.f32.mrb[0].mxu0
  %v688 = vadd.f32 %v539, %v687
  %v689 = vpop.f32.mrb[0].mxu0
  %v690 = vpop.f32.mrb[0].mxu0
  %v691 = vadd.f32 %v539, %v690
  %v692 = vpop.f32.mrb[0].mxu0
  %693 = vmatprep.mubr.bf16.mxu0 %v477
  %694 = vmatmul.mubr.bf16.gmra.mrb[0].mxu0 %v476
  %v695 = vpop.f32.mrb[0].mxu0
  %v696 = vadd.f32 %v539, %v695
  %v697 = vpop.f32.mrb[0].mxu0
  %v698 = vpop.f32.mrb[0].mxu0
  %v699 = vadd.f32 %v539, %v698
  %v700 = vpop.f32.mrb[0].mxu0
  %701 = vmatprep.mubr.bf16.mxu0 %v479
  %702 = vmatmul.mubr.bf16.gmra.mrb[0].mxu0 %v478
  %v703 = vpop.f32.mrb[0].mxu0
  %v704 = vadd.f32 %v539, %v703
  %v705 = vpop.f32.mrb[0].mxu0
  %v706 = vpop.f32.mrb[0].mxu0
  %v707 = vadd.f32 %v539, %v706
  %v708 = vpop.f32.mrb[0].mxu0
  %709 = vmatprep.mubr.bf16.mxu0 %v481
  %710 = vmatmul.mubr.bf16.gmra.mrb[0].mxu0 %v480
  %v711 = vpop.f32.mrb[0].mxu0
  %v712 = vadd.f32 %v539, %v711
  %v713 = vpop.f32.mrb[0].mxu0
  %v714 = vpop.f32.mrb[0].mxu0
  %v715 = vadd.f32 %v539, %v714
  %v716 = vpop.f32.mrb[0].mxu0
  %717 = vmatprep.mubr.bf16.mxu0 %v483
  %718 = vmatmul.mubr.bf16.gmra.mrb[0].mxu0 %v482
  %v719 = vpop.f32.mrb[0].mxu0
  %v720 = vadd.f32 %v539, %v719
  %v721 = vpop.f32.mrb[0].mxu0
  %v722 = vpop.f32.mrb[0].mxu0
  %v723 = vadd.f32 %v539, %v722
  %v724 = vpop.f32.mrb[0].mxu0
  %725 = vmatprep.mubr.bf16.mxu0 %v485
  %726 = vmatmul.mubr.bf16.gmra.mrb[0].mxu0 %v484
  %v727 = vpop.f32.mrb[0].mxu0
  %v728 = vadd.f32 %v539, %v727
  %v729 = vpop.f32.mrb[0].mxu0
  %v730 = vpop.f32.mrb[0].mxu0
  %v731 = vadd.f32 %v539, %v730
  %v732 = vpop.f32.mrb[0].mxu0
  %733 = vmatprep.mubr.bf16.mxu0 %v487
  %734 = vmatmul.mubr.bf16.gmra.mrb[0].mxu0 %v486
  %v735 = vpop.f32.mrb[0].mxu0
  %v736 = vadd.f32 %v539, %v735
  %v737 = vpop.f32.mrb[0].mxu0
  %v738 = vpop.f32.mrb[0].mxu0
  %v739 = vadd.f32 %v539, %v738
  %v740 = vpop.f32.mrb[0].mxu0
  %741 = vmatprep.mubr.bf16.mxu0 %v489
  %742 = vmatmul.mubr.bf16.gmra.mrb[0].mxu0 %v488
  %v743 = vpop.f32.mrb[0].mxu0
  %v744 = vadd.f32 %v539, %v743
  %v745 = vpop.f32.mrb[0].mxu0
  %v746 = vpop.f32.mrb[0].mxu0
  %v747 = vadd.f32 %v539, %v746
  %v748 = vpop.f32.mrb[0].mxu0
  %749 = vmatprep.mubr.bf16.mxu0 %v491
  %750 = vmatmul.mubr.bf16.gmra.mrb[0].mxu0 %v490
  %v751 = vpop.f32.mrb[0].mxu0
  %v752 = vadd.f32 %v539, %v751
  %v753 = vpop.f32.mrb[0].mxu0
  %v754 = vpop.f32.mrb[0].mxu0
  %v755 = vadd.f32 %v539, %v754
  %v756 = vpop.f32.mrb[0].mxu0
  %757 = vmatprep.mubr.bf16.mxu0 %v493
  %758 = vmatmul.mubr.bf16.gmra.mrb[0].mxu0 %v492
  %v759 = vpop.f32.mrb[0].mxu0
  %v760 = vadd.f32 %v539, %v759
  %v761 = vpop.f32.mrb[0].mxu0
  %v762 = vpop.f32.mrb[0].mxu0
  %v763 = vadd.f32 %v539, %v762
  %v764 = vpop.f32.mrb[0].mxu0
  %765 = vmatprep.mubr.bf16.mxu0 %v495
  %766 = vmatmul.mubr.bf16.gmra.mrb[0].mxu0 %v494
  %v767 = vpop.f32.mrb[0].mxu0
  %v768 = vadd.f32 %v539, %v767
  %v769 = vpop.f32.mrb[0].mxu0
  %v770 = vpop.f32.mrb[0].mxu0
  %v771 = vadd.f32 %v539, %v770
  %v772 = vpop.f32.mrb[0].mxu0
  %773 = vmatprep.mubr.bf16.mxu0 %v497
  %774 = vmatmul.mubr.bf16.gmra.mrb[0].mxu0 %v496
  %v775 = vpop.f32.mrb[0].mxu0
  %v776 = vadd.f32 %v539, %v775
  %v777 = vpop.f32.mrb[0].mxu0
  %v778 = vpop.f32.mrb[0].mxu0
  %v779 = vadd.f32 %v539, %v778
  %v780 = vpop.f32.mrb[0].mxu0
  %781 = vmatprep.mubr.bf16.mxu0 %v499
  %782 = vmatmul.mubr.bf16.gmra.mrb[0].mxu0 %v498
  %v783 = vpop.f32.mrb[0].mxu0
  %v784 = vadd.f32 %v539, %v783
  %v785 = vpop.f32.mrb[0].mxu0
  %v786 = vpop.f32.mrb[0].mxu0
  %v787 = vadd.f32 %v539, %v786
  %v788 = vpop.f32.mrb[0].mxu0
  %789 = vmatprep.mubr.bf16.mxu0 %v501
  %790 = vmatmul.mubr.bf16.gmra.mrb[0].mxu0 %v500
  %v791 = vpop.f32.mrb[0].mxu0
  %v792 = vadd.f32 %v539, %v791
  %v793 = vpop.f32.mrb[0].mxu0
  %v794 = vpop.f32.mrb[0].mxu0
  %v795 = vadd.f32 %v539, %v794
  %v796 = vpop.f32.mrb[0].mxu0
  %797 = vdwg.mxu0
  %v798 = vmax.f32 %v672, 0.0
  %v799 = vmax.f32 %v675, 0.0
  %v800 = vmax.f32 %v680, 0.0
  %v801 = vmax.f32 %v683, 0.0
  %v802 = vmax.f32 %v688, 0.0
  %v803 = vmax.f32 %v691, 0.0
  %v804 = vmax.f32 %v696, 0.0
  %v805 = vmax.f32 %v699, 0.0
  %v806 = vmax.f32 %v704, 0.0
  %v807 = vmax.f32 %v707, 0.0
  %v808 = vmax.f32 %v712, 0.0
  %v809 = vmax.f32 %v715, 0.0
  %v810 = vmax.f32 %v720, 0.0
  %v811 = vmax.f32 %v723, 0.0
  %v812 = vmax.f32 %v728, 0.0
  %v813 = vmax.f32 %v731, 0.0
  %v814 = vmax.f32 %v736, 0.0
  %v815 = vmax.f32 %v739, 0.0
  %v816 = vmax.f32 %v744, 0.0
  %v817 = vmax.f32 %v747, 0.0
  %v818 = vmax.f32 %v752, 0.0
  %v819 = vmax.f32 %v755, 0.0
  %v820 = vmax.f32 %v760, 0.0
  %v821 = vmax.f32 %v763, 0.0
  %v822 = vmax.f32 %v768, 0.0
  %v823 = vmax.f32 %v771, 0.0
  %v824 = vmax.f32 %v776, 0.0
  %v825 = vmax.f32 %v779, 0.0
  %v826 = vmax.f32 %v784, 0.0
  %v827 = vmax.f32 %v787, 0.0
  %v828 = vmax.f32 %v792, 0.0
  %v829 = vmax.f32 %v795, 0.0
  %v830 = vpack.c.bf16 %v799, %v798
  %v831 = vpack.c.bf16 %v801, %v800
  %v832 = vpack.c.bf16 %v803, %v802
  %v833 = vpack.c.bf16 %v805, %v804
  %v834 = vpack.c.bf16 %v807, %v806
  %v835 = vpack.c.bf16 %v809, %v808
  %v836 = vpack.c.bf16 %v811, %v810
  %v837 = vpack.c.bf16 %v813, %v812
  %v838 = vpack.c.bf16 %v815, %v814
  %v839 = vpack.c.bf16 %v817, %v816
  %v840 = vpack.c.bf16 %v819, %v818
  %v841 = vpack.c.bf16 %v821, %v820
  %v842 = vpack.c.bf16 %v823, %v822
  %v843 = vpack.c.bf16 %v825, %v824
  %v844 = vpack.c.bf16 %v827, %v826
  %v845 = vpack.c.bf16 %v829, %v828
  %v846 = vld [vmem:[%s5] sm:$0xf]
  %v847 = vld [vmem:[%s5 + $0x4] sm:$0xf]
  %v848 = vld [vmem:[%s5 + $0x8] sm:$0xf]
  %v849 = vld [vmem:[%s5 + $0xc] sm:$0xf]
  %v850 = vld [vmem:[%s5 + $0x10] sm:$0xf]
  %v851 = vld [vmem:[%s5 + $0x14] sm:$0xf]
  %v852 = vld [vmem:[%s5 + $0x18] sm:$0xf]
  %v853 = vld [vmem:[%s5 + $0x1c] sm:$0xf]
  %v854 = vld [vmem:[%s5 + $0x20] sm:$0xf]
  %v855 = vld [vmem:[%s5 + $0x24] sm:$0xf]
  %v856 = vld [vmem:[%s5 + $0x28] sm:$0xf]
  %v857 = vld [vmem:[%s5 + $0x2c] sm:$0xf]
  %v858 = vld [vmem:[%s5 + $0x30] sm:$0xf]
  %v859 = vld [vmem:[%s5 + $0x34] sm:$0xf]
  %v860 = vld [vmem:[%s5 + $0x38] sm:$0xf]
  %v861 = vld [vmem:[%s5 + $0x3c] sm:$0xf]
  %v862 = vld [vmem:[%s6] sm:$0x1]
  %v864 = vlaneseq
  %v865 = vshrl.u32 %v864, 7
  %v866 = vsub.s32 0, %v865
  %v867 = vrot.slane %v862, %v866
  %v885 = vunpack.c.l.b16 %v846
  %v886 = vunpack.c.l.b16 %v847
  %v887 = vunpack.c.l.b16 %v848
  %v888 = vunpack.c.l.b16 %v849
  %v889 = vunpack.c.l.b16 %v850
  %v890 = vunpack.c.l.b16 %v851
  %v891 = vunpack.c.l.b16 %v852
  %v892 = vunpack.c.l.b16 %v853
  %v893 = vunpack.c.l.b16 %v854
  %v894 = vunpack.c.l.b16 %v855
  %v895 = vunpack.c.l.b16 %v856
  %v896 = vunpack.c.l.b16 %v857
  %v897 = vunpack.c.l.b16 %v858
  %v898 = vunpack.c.l.b16 %v859
  %v899 = vunpack.c.l.b16 %v860
  %v900 = vunpack.c.l.b16 %v861
  %v901 = vpack.c.b16 %v886, %v885
  %v902 = vpack.c.b16 %v888, %v887
  %v903 = vpack.c.b16 %v890, %v889
  %v904 = vpack.c.b16 %v892, %v891
  %v905 = vpack.c.b16 %v894, %v893
  %v906 = vpack.c.b16 %v896, %v895
  %v907 = vpack.c.b16 %v898, %v897
  %v908 = vpack.c.b16 %v900, %v899
  %917 = vmatprep.subr.bf16.mxu0 0
  %918 = vmatpush1.bf16.msra.mxu0 %v901
  %919 = vmatprep.subr.bf16.mxu0 0
  %920 = vmatpush1.bf16.msra.mxu0 %v902
  %921 = vmatprep.subr.bf16.mxu0 0
  %922 = vmatpush1.bf16.msra.mxu0 %v903
  %923 = vmatprep.subr.bf16.mxu0 0
  %924 = vmatpush1.bf16.msra.mxu0 %v904
  %925 = vmatprep.subr.bf16.mxu0 0
  %926 = vmatpush1.bf16.msra.mxu0 %v905
  %927 = vmatprep.subr.bf16.mxu0 0
  %928 = vmatpush1.bf16.msra.mxu0 %v906
  %929 = vmatprep.subr.bf16.mxu0 0
  %930 = vmatpush1.bf16.msra.mxu0 %v907
  %931 = vmatprep.subr.bf16.mxu0 0
  %932 = vmatpush1.bf16.msra.mxu0 %v908
  %933 = vmatprep.subr.bf16.mxu0 0
  %934 = vmatpush1.bf16.msra.mxu0 0
  %935 = vmatprep.subr.bf16.mxu0 0
  %936 = vmatpush1.bf16.msra.mxu0 0
  %937 = vmatprep.subr.bf16.mxu0 0
  %938 = vmatpush1.bf16.msra.mxu0 0
  %939 = vmatprep.subr.bf16.mxu0 0
  %940 = vmatpush1.bf16.msra.mxu0 0
  %941 = vmatprep.subr.bf16.mxu0 0
  %942 = vmatpush1.bf16.msra.mxu0 0
  %943 = vmatprep.subr.bf16.mxu0 0
  %944 = vmatpush1.bf16.msra.mxu0 0
  %945 = vmatprep.subr.bf16.mxu0 0
  %946 = vmatpush1.bf16.msra.mxu0 0
  %947 = vmatprep.subr.bf16.mxu0 0
  %948 = vmatpush1.bf16.msra.mxu0 0
  %949 = vmatprep.mubr.bf16.mxu0 0
  %950 = vmatmul.mubr.bf16.gmra.mrb[0].mxu0 %v830
  %v951 = vpop.f32.mrb[0].mxu0
  %v952 = vadd.f32 %v867, %v951
  %v953 = vpop.f32.mrb[0].mxu0
  %v954 = vpop.f32.mrb[0].mxu0
  %v955 = vadd.f32 %v867, %v954
  %v956 = vpop.f32.mrb[0].mxu0
  %957 = vmatprep.mubr.bf16.mxu0 0
  %958 = vmatmul.mubr.bf16.gmra.mrb[0].mxu0 %v831
  %v959 = vpop.f32.mrb[0].mxu0
  %v960 = vadd.f32 %v867, %v959
  %v961 = vpop.f32.mrb[0].mxu0
  %v962 = vpop.f32.mrb[0].mxu0
  %v963 = vadd.f32 %v867, %v962
  %v964 = vpop.f32.mrb[0].mxu0
  %965 = vmatprep.mubr.bf16.mxu0 0
  %966 = vmatmul.mubr.bf16.gmra.mrb[0].mxu0 %v832
  %v967 = vpop.f32.mrb[0].mxu0
  %v968 = vadd.f32 %v867, %v967
  %v969 = vpop.f32.mrb[0].mxu0
  %v970 = vpop.f32.mrb[0].mxu0
  %v971 = vadd.f32 %v867, %v970
  %v972 = vpop.f32.mrb[0].mxu0
  %973 = vmatprep.mubr.bf16.mxu0 0
  %974 = vmatmul.mubr.bf16.gmra.mrb[0].mxu0 %v833
  %v975 = vpop.f32.mrb[0].mxu0
  %v976 = vadd.f32 %v867, %v975
  %v977 = vpop.f32.mrb[0].mxu0
  %v978 = vpop.f32.mrb[0].mxu0
  %v979 = vadd.f32 %v867, %v978
  %v980 = vpop.f32.mrb[0].mxu0
  %981 = vmatprep.mubr.bf16.mxu0 0
  %982 = vmatmul.mubr.bf16.gmra.mrb[0].mxu0 %v834
  %v983 = vpop.f32.mrb[0].mxu0
  %v984 = vadd.f32 %v867, %v983
  %v985 = vpop.f32.mrb[0].mxu0
  %v986 = vpop.f32.mrb[0].mxu0
  %v987 = vadd.f32 %v867, %v986
  %v988 = vpop.f32.mrb[0].mxu0
  %989 = vmatprep.mubr.bf16.mxu0 0
  %990 = vmatmul.mubr.bf16.gmra.mrb[0].mxu0 %v835
  %v991 = vpop.f32.mrb[0].mxu0
  %v992 = vadd.f32 %v867, %v991
  %v993 = vpop.f32.mrb[0].mxu0
  %v994 = vpop.f32.mrb[0].mxu0
  %v995 = vadd.f32 %v867, %v994
  %v996 = vpop.f32.mrb[0].mxu0
  %997 = vmatprep.mubr.bf16.mxu0 0
  %998 = vmatmul.mubr.bf16.gmra.mrb[0].mxu0 %v836
  %v999 = vpop.f32.mrb[0].mxu0
  %v1000 = vadd.f32 %v867, %v999
  %v1001 = vpop.f32.mrb[0].mxu0
  %v1002 = vpop.f32.mrb[0].mxu0
  %v1003 = vadd.f32 %v867, %v1002
  %v1004 = vpop.f32.mrb[0].mxu0
  %1005 = vmatprep.mubr.bf16.mxu0 0
  %1006 = vmatmul.mubr.bf16.gmra.mrb[0].mxu0 %v837
  %v1007 = vpop.f32.mrb[0].mxu0
  %v1008 = vadd.f32 %v867, %v1007
  %v1009 = vpop.f32.mrb[0].mxu0
  %v1010 = vpop.f32.mrb[0].mxu0
  %v1011 = vadd.f32 %v867, %v1010
  %v1012 = vpop.f32.mrb[0].mxu0
  %1013 = vmatprep.mubr.bf16.mxu0 0
  %1014 = vmatmul.mubr.bf16.gmra.mrb[0].mxu0 %v838
  %v1015 = vpop.f32.mrb[0].mxu0
  %v1016 = vadd.f32 %v867, %v1015
  %v1017 = vpop.f32.mrb[0].mxu0
  %v1018 = vpop.f32.mrb[0].mxu0
  %v1019 = vadd.f32 %v867, %v1018
  %v1020 = vpop.f32.mrb[0].mxu0
  %1021 = vmatprep.mubr.bf16.mxu0 0
  %1022 = vmatmul.mubr.bf16.gmra.mrb[0].mxu0 %v839
  %v1023 = vpop.f32.mrb[0].mxu0
  %v1024 = vadd.f32 %v867, %v1023
  %v1025 = vpop.f32.mrb[0].mxu0
  %v1026 = vpop.f32.mrb[0].mxu0
  %v1027 = vadd.f32 %v867, %v1026
  %v1028 = vpop.f32.mrb[0].mxu0
  %1029 = vmatprep.mubr.bf16.mxu0 0
  %1030 = vmatmul.mubr.bf16.gmra.mrb[0].mxu0 %v840
  %v1031 = vpop.f32.mrb[0].mxu0
  %v1032 = vadd.f32 %v867, %v1031
  %v1033 = vpop.f32.mrb[0].mxu0
  %v1034 = vpop.f32.mrb[0].mxu0
  %v1035 = vadd.f32 %v867, %v1034
  %v1036 = vpop.f32.mrb[0].mxu0
  %1037 = vmatprep.mubr.bf16.mxu0 0
  %1038 = vmatmul.mubr.bf16.gmra.mrb[0].mxu0 %v841
  %v1039 = vpop.f32.mrb[0].mxu0
  %v1040 = vadd.f32 %v867, %v1039
  %v1041 = vpop.f32.mrb[0].mxu0
  %v1042 = vpop.f32.mrb[0].mxu0
  %v1043 = vadd.f32 %v867, %v1042
  %v1044 = vpop.f32.mrb[0].mxu0
  %1045 = vmatprep.mubr.bf16.mxu0 0
  %1046 = vmatmul.mubr.bf16.gmra.mrb[0].mxu0 %v842
  %v1047 = vpop.f32.mrb[0].mxu0
  %v1048 = vadd.f32 %v867, %v1047
  %v1049 = vpop.f32.mrb[0].mxu0
  %v1050 = vpop.f32.mrb[0].mxu0
  %v1051 = vadd.f32 %v867, %v1050
  %v1052 = vpop.f32.mrb[0].mxu0
  %1053 = vmatprep.mubr.bf16.mxu0 0
  %1054 = vmatmul.mubr.bf16.gmra.mrb[0].mxu0 %v843
  %v1055 = vpop.f32.mrb[0].mxu0
  %v1056 = vadd.f32 %v867, %v1055
  %v1057 = vpop.f32.mrb[0].mxu0
  %v1058 = vpop.f32.mrb[0].mxu0
  %v1059 = vadd.f32 %v867, %v1058
  %v1060 = vpop.f32.mrb[0].mxu0
  %1061 = vmatprep.mubr.bf16.mxu0 0
  %1062 = vmatmul.mubr.bf16.gmra.mrb[0].mxu0 %v844
  %v1063 = vpop.f32.mrb[0].mxu0
  %v1064 = vadd.f32 %v867, %v1063
  %v1065 = vpop.f32.mrb[0].mxu0
  %v1066 = vpop.f32.mrb[0].mxu0
  %v1067 = vadd.f32 %v867, %v1066
  %v1068 = vpop.f32.mrb[0].mxu0
  %1069 = vmatprep.mubr.bf16.mxu0 0
  %1070 = vmatmul.mubr.bf16.gmra.mrb[0].mxu0 %v845
  %v1071 = vpop.f32.mrb[0].mxu0
  %v1072 = vadd.f32 %v867, %v1071
  %v1073 = vpop.f32.mrb[0].mxu0
  %v1074 = vpop.f32.mrb[0].mxu0
  %v1075 = vadd.f32 %v867, %v1074
  %v1076 = vpop.f32.mrb[0].mxu0
  %1077 = vdwg.mxu0
  %1078 = vst [vmem:[%s7] sm:$0xff] %v952
  %1079 = vst [vmem:[%s7 + $0x8] sm:$0xff] %v955
  %1080 = vst [vmem:[%s7 + $0x10] sm:$0xff] %v960
  %1081 = vst [vmem:[%s7 + $0x18] sm:$0xff] %v963
  %1082 = vst [vmem:[%s7 + $0x20] sm:$0xff] %v968
  %1083 = vst [vmem:[%s7 + $0x28] sm:$0xff] %v971
  %1084 = vst [vmem:[%s7 + $0x30] sm:$0xff] %v976
  %1085 = vst [vmem:[%s7 + $0x38] sm:$0xff] %v979
  %1086 = vst [vmem:[%s7 + $0x40] sm:$0xff] %v984
  %1087 = vst [vmem:[%s7 + $0x48] sm:$0xff] %v987
  %1088 = vst [vmem:[%s7 + $0x50] sm:$0xff] %v992
  %1089 = vst [vmem:[%s7 + $0x58] sm:$0xff] %v995
  %1090 = vst [vmem:[%s7 + $0x60] sm:$0xff] %v1000
  %1091 = vst [vmem:[%s7 + $0x68] sm:$0xff] %v1003
  %1092 = vst [vmem:[%s7 + $0x70] sm:$0xff] %v1008
  %1093 = vst [vmem:[%s7 + $0x78] sm:$0xff] %v1011
  %1094 = vst [vmem:[%s7 + $0x80] sm:$0xff] %v1016
  %1095 = vst [vmem:[%s7 + $0x88] sm:$0xff] %v1019
  %1096 = vst [vmem:[%s7 + $0x90] sm:$0xff] %v1024
  %1097 = vst [vmem:[%s7 + $0x98] sm:$0xff] %v1027
  %1098 = vst [vmem:[%s7 + $0xa0] sm:$0xff] %v1032
  %1099 = vst [vmem:[%s7 + $0xa8] sm:$0xff] %v1035
  %1100 = vst [vmem:[%s7 + $0xb0] sm:$0xff] %v1040
  %1101 = vst [vmem:[%s7 + $0xb8] sm:$0xff] %v1043
  %1102 = vst [vmem:[%s7 + $0xc0] sm:$0xff] %v1048
  %1103 = vst [vmem:[%s7 + $0xc8] sm:$0xff] %v1051
  %1104 = vst [vmem:[%s7 + $0xd0] sm:$0xff] %v1056
  %1105 = vst [vmem:[%s7 + $0xd8] sm:$0xff] %v1059
  %1106 = vst [vmem:[%s7 + $0xe0] sm:$0xff] %v1064
  %1107 = vst [vmem:[%s7 + $0xe8] sm:$0xff] %v1067
  %1108 = vst [vmem:[%s7 + $0xf0] sm:$0xff] %v1072
  %1109 = vst [vmem:[%s7 + $0xf8] sm:$0xff] %v1075
  // Predicated region
  $region30: #{qnetwork_forward.1} parent=0 // pred_check
    _
  $region31: #{qnetwork_forward.1} parent=0 // pred_check_branch
    %1111 = sbr.rel (0) target = $region33
  $region32: #{qnetwork_forward.1} parent=0 // pred_region
    _
  $region33: #{qnetwork_forward.1} parent=0 // pred_fallthru
    _
  // Predicated region
  $region34: #{qnetwork_forward.1} parent=0 // pred_check
    _
  $region35: #{qnetwork_forward.1} parent=0 // pred_check_branch
    %1113 = sbr.rel (0) target = $region37
  $region36: #{qnetwork_forward.1} parent=0 // pred_region
    _
  $region37: #{qnetwork_forward.1} parent=0 // pred_fallthru
    _

</llo_original>
